<compile_context>
chip_gen: v7x
topology: tpu7x:2x2x1
jax: 0.10.0
libtpu: 0.0.40
codegen_flags: <defaults>
</compile_context>

<pallas_src>
import jax
import jax.numpy as jnp
from jax.experimental import pallas as pl
from jax.experimental.pallas import tpu as pltpu


# ---------------------------------------------------------------------------
# Model dimensions / slab layout
# ---------------------------------------------------------------------------
_IN_F, _H1, _H2, _OUT = 4, 24, 32, 2

_XA_ROWS = 8    # x_aug rows : 4 features + 1 ones row + 3 pad  (sublane tile)
_H1A = 32       # h1_aug rows: 24 features + 1 carried ones + 7 pad
_H2A = 40       # h2_aug rows: 32 features + 1 carried ones + 7 pad

# Sublane row offsets of each layer's augmented weight block inside the slab.
# All offsets are multiples of 16 so bf16 (16,128)-tiled slices stay aligned.
_R1, _R2, _R3 = 0, 32, 80
_SLAB_SHAPE = (96, 128)          # bf16 -> 24 KiB, single resident DMA

_LANE_TILE_CAP = 32768           # big tiles amortize per-grid-step overhead


def _cdiv(a, b):
    return -(-a // b)


def _round_up(a, b):
    return _cdiv(a, b) * b


# ---------------------------------------------------------------------------
# Kernel
# ---------------------------------------------------------------------------
def dqn_kernel(x_ref, p_ref, o_ref):
    """One lane-tile of the DQN forward pass.

    x_ref : (8,  TB) f32  rows 0-3 = state features, row 4 = ones, rows 5-7 = 0
    p_ref : (96, 128) bf16 packed parameter slab (biases folded in)
    o_ref : (2,  TB) f32  Q-values, batch on lanes (lane-dense store)
    """
    x = x_ref[...].astype(jnp.bfloat16)                       # (8, TB)

    # layer 1: 4 -> 24 (+ ones-carry row), bias folded via the ones row of x.
    # Weights are stored (out, in) so jnp.dot contracts the LHS minor (lane)
    # dim against the activations' sublane dim -- no in-kernel transpose of
    # the stationary operand (verify with dump_lowering() if in doubt).
    w1a = p_ref[_R1:_R1 + _H1A, 0:_XA_ROWS]                   # (32, 8)
    h1 = jnp.maximum(jnp.dot(w1a, x, preferred_element_type=jnp.float32), 0.0)
    h1 = h1.astype(jnp.bfloat16)                              # (32, TB)

    # layer 2: 24 -> 32 (+ ones-carry row), bias folded via h1's ones row.
    w2a = p_ref[_R2:_R2 + _H2A, 0:_H1A]                       # (40, 32)
    h2 = jnp.maximum(jnp.dot(w2a, h1, preferred_element_type=jnp.float32), 0.0)
    h2 = h2.astype(jnp.bfloat16)                              # (40, TB)

    # layer 3: 32 -> 2, bias folded via h2's ones row.
    w3a = p_ref[_R3:_R3 + _OUT, 0:_H2A]                       # (2, 40)
    o_ref[...] = jnp.dot(w3a, h2, preferred_element_type=jnp.float32)


# ---------------------------------------------------------------------------
# Parameter packing (do this ONCE per optimizer step, not per forward call)
# ---------------------------------------------------------------------------
def pack_params(params):
    """Pack PyTorch-layout params (W:(out,in), b:(out,)) into one (96,128)
    bf16 slab with biases folded in via carried 'ones' rows."""
    w1, b1, w2, b2, w3, b3 = [jnp.asarray(p, jnp.float32) for p in params]
    slab = jnp.zeros(_SLAB_SHAPE, jnp.float32)

    # layer 1 block (rows 0..31, cols 0..7): [W1 | b1], ones-carry row 24.
    slab = slab.at[_R1:_R1 + _H1, 0:_IN_F].set(w1)            # (24, 4)
    slab = slab.at[_R1:_R1 + _H1, _IN_F].set(b1)              # b1 in col 4
    slab = slab.at[_R1 + _H1, _IN_F].set(1.0)                 # carry ones -> h1 row 24

    # layer 2 block (rows 32..71, cols 0..31): [W2 | b2], ones-carry row 64.
    slab = slab.at[_R2:_R2 + _H2, 0:_H1].set(w2)              # (32, 24)
    slab = slab.at[_R2:_R2 + _H2, _H1].set(b2)                # b2 in col 24
    slab = slab.at[_R2 + _H2, _H1].set(1.0)                   # carry ones -> h2 row 32

    # layer 3 block (rows 80..81, cols 0..32): [W3 | b3].
    slab = slab.at[_R3:_R3 + _OUT, 0:_H2].set(w3)             # (2, 32)
    slab = slab.at[_R3:_R3 + _OUT, _H2].set(b3)               # b3 in col 32

    return slab.astype(jnp.bfloat16)


# ---------------------------------------------------------------------------
# Forward pass
# ---------------------------------------------------------------------------
def _choose_lane_tile(batch):
    """Lane tile: multiple of 128, <= _LANE_TILE_CAP, and for B > 128 chosen
    as ~ceil(B/2) so the grid has >= 2 steps (v7x megacore sharding)."""
    full = _round_up(max(int(batch), 1), 128)
    if full <= 128:
        return 128
    half = _round_up(_cdiv(int(batch), 2), 128)
    return min(half, _LANE_TILE_CAP)


def dqn_apply_t(xt_aug, packed, *, lane_tile=None):
    """Recommended entry point (no layout plumbing).

    xt_aug : (8, B) f32, batch on lanes; rows 0-3 = state features,
             row 4 = ones, rows 5-7 = 0.
    packed : (96, 128) bf16 slab from pack_params().
    returns: (2, B) f32 Q-values, batch on lanes.
    """
    rows, b = xt_aug.shape
    assert rows == _XA_ROWS, f"expected {_XA_ROWS} input rows, got {rows}"
    xt_aug = xt_aug.astype(jnp.float32)

    if lane_tile is None:
        lane_tile = _choose_lane_tile(b)
    lane_tile = _round_up(int(lane_tile), 128)

    b_pad = _round_up(b, lane_tile)
    if b_pad != b:
        xt_aug = jnp.pad(xt_aug, ((0, 0), (0, b_pad - b)))

    grid = b_pad // lane_tile
    cost = pl.CostEstimate(
        flops=2 * (_IN_F * _H1 + _H1 * _H2 + _H2 * _OUT) * b_pad,
        transcendentals=0,
        bytes_accessed=(_XA_ROWS + _OUT) * 4 * b_pad
        + packed.size * packed.dtype.itemsize,
    )

    out_t = pl.pallas_call(
        dqn_kernel,
        out_shape=jax.ShapeDtypeStruct((_OUT, b_pad), jnp.float32),
        grid_spec=pltpu.PrefetchScalarGridSpec(
            num_scalar_prefetch=0,
            grid=(grid,),
            in_specs=[
                pl.BlockSpec((_XA_ROWS, lane_tile), lambda i: (0, i)),
                pl.BlockSpec(_SLAB_SHAPE, lambda i: (0, 0)),  # resident slab
            ],
            out_specs=pl.BlockSpec((_OUT, lane_tile), lambda i: (0, i)),
        ),
        compiler_params=pltpu.CompilerParams(
            dimension_semantics=("parallel",),
            vmem_limit_bytes=32 * 1024 * 1024,
        ),
        cost_estimate=cost,
    )(xt_aug, packed)

    return out_t[:, :b]


def dqn_forward(x, packed, *, lane_tile=None):
    """x: (B, 4) f32 states -> (B, 2) f32 Q-values.

    Convenience wrapper: the (B,4)->(8,Bp) transpose/pad and the final
    (2,B)->(B,2) transpose are extra HBM passes.  For replay-buffer sized
    batches, keep states in (features, batch) layout and call dqn_apply_t.
    """
    B = x.shape[0]
    if lane_tile is None:
        lane_tile = _choose_lane_tile(B)
    lane_tile = _round_up(int(lane_tile), 128)
    b_pad = _round_up(B, lane_tile)

    xt_aug = jnp.zeros((_XA_ROWS, b_pad), jnp.float32)
    xt_aug = xt_aug.at[_IN_F, :].set(1.0)          # ones row folds b1 into dot 1
    xt_aug = xt_aug.at[:_IN_F, :B].set(x.T)

    out_t = dqn_apply_t(xt_aug, packed, lane_tile=lane_tile)
    return out_t[:, :B].T


def dump_lowering(batch=1024):
    """Debug helper (perf-review item): inspect the Mosaic MLIR to confirm the
    layer-2/3 dot LHS loads do not insert a vxpose; if they do, repack the slab
    in the transposed orientation."""
    x = jnp.zeros((batch, _IN_F), jnp.float32)
    packed = pack_params(init_params(jax.random.PRNGKey(0)))
    print(pl.lower_as_mlir(lambda x_, p_: dqn_forward(x_, p_), x, packed))


# ---------------------------------------------------------------------------
# Init / references
# ---------------------------------------------------------------------------
def init_params(key):
    """PyTorch nn.Linear default init: U[-1/sqrt(fan_in), 1/sqrt(fan_in)],
    weights stored (out_features, in_features), biases (out_features,)."""
    dims = [(_IN_F, _H1), (_H1, _H2), (_H2, _OUT)]
    params = []
    for fan_in, fan_out in dims:
        key, kw, kb = jax.random.split(key, 3)
        bound = 1.0 / jnp.sqrt(jnp.float32(fan_in))
        w = jax.random.uniform(kw, (fan_out, fan_in), jnp.float32, -bound, bound)
        b = jax.random.uniform(kb, (fan_out,), jnp.float32, -bound, bound)
        params.extend([w, b])
    return tuple(params)


def dqn_reference(x, params):
    """Pure-JAX f32 reference (PyTorch semantics: y = x @ W.T + b)."""
    w1, b1, w2, b2, w3, b3 = params
    h1 = jnp.maximum(x @ w1.T + b1, 0.0)
    h2 = jnp.maximum(h1 @ w2.T + b2, 0.0)
    return h2 @ w3.T + b3


def dqn_reference_bf16(x, params):
    """Reference matching the kernel numerics (bf16 MXU operands, f32 accum)."""
    w1, b1, w2, b2, w3, b3 = params

    def lin(h, w, b):
        return (
            jnp.dot(h.astype(jnp.bfloat16), w.T.astype(jnp.bfloat16),
                    preferred_element_type=jnp.float32)
            + b.astype(jnp.bfloat16).astype(jnp.float32)
        )

    h1 = jnp.maximum(lin(x, w1, b1), 0.0)
    h2 = jnp.maximum(lin(h1, w2, b2), 0.0)
    return lin(h2, w3, b3)


# ---------------------------------------------------------------------------
# Demo / correctness check
# ---------------------------------------------------------------------------
if __name__ == "__main__":
    key = jax.random.PRNGKey(0)
    key, kx = jax.random.split(key)

    batch = 8
    x = jax.random.normal(kx, (batch, _IN_F), jnp.float32)  # CartPole: 4 features
    params = init_params(key)
    packed = pack_params(params)      # pack ONCE, reuse across forward calls

    # Small (action-selection sized) batch, single grid step.
    out = jax.block_until_ready(dqn_forward(x, packed))
    assert out.shape == (batch, _OUT)

    ref_bf16 = dqn_reference_bf16(x, params)
    ref_f32 = dqn_reference(x, params)
    assert jnp.allclose(out, ref_bf16, atol=2e-3, rtol=2e-3)
    assert jnp.allclose(out, ref_f32, atol=5e-2, rtol=5e-2)

    # Larger (replay-buffer sized) batch, multi-step "parallel" grid, same slab.
    key, kb = jax.random.split(key)
    big = 4096
    xb = jax.random.normal(kb, (big, _IN_F), jnp.float32)
    out_big = jax.block_until_ready(dqn_forward(xb, packed))
    assert out_big.shape == (big, _OUT)
    assert jnp.allclose(out_big, dqn_reference(xb, params), atol=5e-2, rtol=5e-2)

    print("KERNEL_OK")
</pallas_src>

<mosaic_0001>
module attributes {stable_mosaic.version = 11 : i64} {
  func.func @dqn_kernel(%arg0: i32, %arg1: memref<8x128xf32, #tpu.memory_space<vmem>>, %arg2: memref<96x128xbf16, #tpu.memory_space<vmem>>, %arg3: memref<2x128xf32, #tpu.memory_space<vmem>>) attributes {dimension_semantics = [#tpu.dimension_semantics<parallel>], iteration_bounds = array<i64: 1>, scalar_prefetch = 0 : i64, scratch_operands = 0 : i64, tpu.core_type = #tpu.core_type<tc>, window_params = [{transform_indices = @transform_0, window_bounds = array<i64: 8, 128>}, {pipeline_mode = #tpu.pipeline_mode<synchronous>, transform_indices = @transform_1, window_bounds = array<i64: 96, 128>}, {transform_indices = @transform_2, window_bounds = array<i64: 2, 128>}]} {
    %c0 = arith.constant 0 : index
    %c0_0 = arith.constant 0 : index
    %0 = vector.load %arg1[%c0, %c0_0] : memref<8x128xf32, #tpu.memory_space<vmem>>, vector<8x128xf32>
    %1 = arith.truncf %0 : vector<8x128xf32> to vector<8x128xbf16>
    %c0_1 = arith.constant 0 : index
    %c0_2 = arith.constant 0 : index
    %2 = vector.load %arg2[%c0_1, %c0_2] : memref<96x128xbf16, #tpu.memory_space<vmem>>, vector<32x8xbf16>
    %cst = arith.constant dense<0.000000e+00> : vector<32x128xf32>
    %3 = tpu.matmul %2, %1, %cst {dimension_numbers = #tpu.dot_dimension_numbers<[1], [0], [0], [1], [0, 0, 1, 1], [], []>} : vector<32x8xbf16>, vector<8x128xbf16>, vector<32x128xf32> -> vector<32x128xf32>
    %cst_3 = arith.constant 0.000000e+00 : f32
    %4 = vector.broadcast %cst_3 : f32 to vector<32x128xf32>
    %5 = arith.maximumf %3, %4 : vector<32x128xf32>
    %6 = arith.truncf %5 : vector<32x128xf32> to vector<32x128xbf16>
    %c32 = arith.constant 32 : index
    %c0_4 = arith.constant 0 : index
    %7 = vector.load %arg2[%c32, %c0_4] : memref<96x128xbf16, #tpu.memory_space<vmem>>, vector<40x32xbf16>
    %cst_5 = arith.constant dense<0.000000e+00> : vector<40x128xf32>
    %8 = tpu.matmul %7, %6, %cst_5 {dimension_numbers = #tpu.dot_dimension_numbers<[1], [0], [0], [1], [0, 0, 1, 1], [], []>} : vector<40x32xbf16>, vector<32x128xbf16>, vector<40x128xf32> -> vector<40x128xf32>
    %cst_6 = arith.constant 0.000000e+00 : f32
    %9 = vector.broadcast %cst_6 : f32 to vector<40x128xf32>
    %10 = arith.maximumf %8, %9 : vector<40x128xf32>
    %11 = arith.truncf %10 : vector<40x128xf32> to vector<40x128xbf16>
    %c80 = arith.constant 80 : index
    %c0_7 = arith.constant 0 : index
    %12 = vector.load %arg2[%c80, %c0_7] : memref<96x128xbf16, #tpu.memory_space<vmem>>, vector<2x40xbf16>
    %cst_8 = arith.constant dense<0.000000e+00> : vector<2x128xf32>
    %13 = tpu.matmul %12, %11, %cst_8 {dimension_numbers = #tpu.dot_dimension_numbers<[1], [0], [0], [1], [0, 0, 1, 1], [], []>} : vector<2x40xbf16>, vector<40x128xbf16>, vector<2x128xf32> -> vector<2x128xf32>
    %c0_9 = arith.constant 0 : index
    %c0_10 = arith.constant 0 : index
    %14 = vector.load %arg3[%c0_9, %c0_10] : memref<2x128xf32, #tpu.memory_space<vmem>>, vector<2x128xf32>
    tpu.vector_store %arg3[%c0_9, %c0_10], %13 {strides = array<i32>} : memref<2x128xf32, #tpu.memory_space<vmem>>, vector<2x128xf32>,
    return
  }
  func.func @transform_0(%arg0: i32) -> (i32, i32) {
    %c0_i32 = arith.constant 0 : i32
    %c0_i32_0 = arith.constant 0 : i32
    return %c0_i32, %arg0 : i32, i32
  }
  func.func @transform_1(%arg0: i32) -> (i32, i32) {
    %c0_i32 = arith.constant 0 : i32
    %c0_i32_0 = arith.constant 0 : i32
    %c0_i32_1 = arith.constant 0 : i32
    return %c0_i32, %c0_i32_0 : i32, i32
  }
  func.func @transform_2(%arg0: i32) -> (i32, i32) {
    %c0_i32 = arith.constant 0 : i32
    %c0_i32_0 = arith.constant 0 : i32
    return %c0_i32, %arg0 : i32, i32
  }
}

</mosaic_0001>

<llo_original>
// kernel: tpu_custom_call.1
$region0: #{tpu_custom_call.1}
  #allocation0 [shape = 'u32[]', space=smem, size = 0x4, offset = 0x4, fixed_abs, tag = 'smem constant byte address 0x4 - core index']
  #allocation1 [shape = 'u32[144,128]{1,0:T(1,128)}', space=vmem, size = 0x12000, scoped, tag = 'internal scratch']
  %s0 = inlined_call_operand.hbm [shape: f32[8,128], index: 0, kind: input, shape index: {}]
  %s1 = inlined_call_operand.hbm [shape: bf16[96,128], index: 1, kind: input, shape index: {}]
  %s2 = inlined_call_operand.hbm [shape: f32[2,128], index: 2, kind: output, shape index: {}]
  %s3 = sld [smem:[#allocation0]]
  $region26: #{tpu_custom_call.1} parent=0
    _
  %s5 = ssub.s32 1, %s3
  %s6 = scalar_select 0, %s5, %s3
  $region1: #{tpu_custom_call.1} parent=0
    #allocation2 [shape = 'u8[4096]{0}', space=vmem, size = 0x1000, scoped, tag = 'input window, operand 0, single buffered']
    #allocation3 [shape = 's32[1]{0}', space=sflag, size = 0x4, scoped, tag = 'scoped memory for tpu_custom_call.1']
    #allocation4 [shape = 's32[1]{0}', space=sflag, size = 0x4, scoped, tag = 'scoped memory for tpu_custom_call.1']
    #allocation5 [shape = 'u8[24576]{0}', space=vmem, size = 0x6000, scoped, tag = 'input window, operand 1, single buffered']
    #allocation6 [shape = 's32[1]{0}', space=sflag, size = 0x4, scoped, tag = 'scoped memory for tpu_custom_call.1']
    #allocation7 [shape = 'u8[1024]{0}', space=vmem, size = 0x400, scoped, tag = 'output window, operand 0, single buffered']
    %7 = vsyncpa [#allocation3], 0
    %8 = vsyncpa [#allocation6], 0
    %9 = vsyncpa [#allocation4], 0
    // Predicated region
    $region2: #{tpu_custom_call.1} parent=1 // pred_check
      _
    $region3: #{tpu_custom_call.1} parent=1 // pred_check_branch
      %11 = sbr.rel (0) target = $region5
    $region4: #{tpu_custom_call.1} parent=1 // pred_region
      %s13 = ssub.s32 128, 128
      %14 = vsyncadd [#allocation3], %s13
      %s16 = sshll.u32 [#allocation2], 4
      %s17 = int_to_ptr.vmem [resolvable:$true] %s16
      %19 = dma.hbm_to_vmem [thread:$0]  %s0, 128, %s17, [#allocation3]
    $region5: #{tpu_custom_call.1} parent=1 // pred_fallthru
      _
    // Predicated region
    $region6: #{tpu_custom_call.1} parent=1 // pred_check
      _
    $region7: #{tpu_custom_call.1} parent=1 // pred_check_branch
      %21 = sbr.rel (0) target = $region9
    $region8: #{tpu_custom_call.1} parent=1 // pred_region
      %s23 = ssub.s32 768, 768
      %24 = vsyncadd [#allocation6], %s23
      %s25 = sshll.u32 [#allocation5], 4
      %s26 = int_to_ptr.vmem [resolvable:$true] %s25
      %31 = dma.hbm_to_vmem [thread:$0]  %s1, 768, %s26, [#allocation6], 64, 64, 4
    $region9: #{tpu_custom_call.1} parent=1 // pred_fallthru
      _
    // Predicated region
    $region10: #{tpu_custom_call.1} parent=1 // pred_check
      _
    $region11: #{tpu_custom_call.1} parent=1 // pred_check_branch
      %33 = sbr.rel (0) target = $region13
    $region12: #{tpu_custom_call.1} parent=1 // pred_region
      %34 = dma.done [#allocation3], 128
    $region13: #{tpu_custom_call.1} parent=1 // pred_fallthru
      _
    // Predicated region
    $region14: #{tpu_custom_call.1} parent=1 // pred_check
      _
    $region15: #{tpu_custom_call.1} parent=1 // pred_check_branch
      %36 = sbr.rel (0) target = $region17
    $region16: #{tpu_custom_call.1} parent=1 // pred_region
      %37 = dma.done [#allocation6], 768
    $region17: #{tpu_custom_call.1} parent=1 // pred_fallthru
      _
    %v39 = vld [vmem:[#allocation2] sm:$0xff]
    %v40 = vpack.c.bf16 %v39, %v39
    %v41 = vld [vmem:[#allocation5] sm:$0xf]
    %v42 = vld [vmem:[#allocation5 + $0x4] sm:$0xf]
    %v43 = vld [vmem:[#allocation5 + $0x8] sm:$0xf]
    %v44 = vld [vmem:[#allocation5 + $0xc] sm:$0xf]
    %v49 = vunpack.c.l.b16 %v41
    %v50 = vunpack.c.l.b16 %v42
    %v51 = vunpack.c.l.b16 %v43
    %v52 = vunpack.c.l.b16 %v44
    %v53 = vpack.c.b16 %v50, %v49
    %v54 = vpack.c.b16 %v52, %v51
    %vm55 = vcmask 64512
    %v57 = vsel %vm55, %v53, 0
    %v60 = vsel %vm55, %v54, 0
    %vm62 = vcmask 1043456
    %v64 = vsel %vm62, %v40, 0
    %66 = vmatprep.subr.bf16.mxu0 0
    %67 = vmatpush1.bf16.msra.mxu0 %v64
    %68 = vmatprep.subr.bf16.mxu0 0
    %69 = vmatpush1.bf16.msra.mxu0 0
    %70 = vmatprep.subr.bf16.mxu0 0
    %71 = vmatpush1.bf16.msra.mxu0 0
    %72 = vmatprep.subr.bf16.mxu0 0
    %73 = vmatpush1.bf16.msra.mxu0 0
    %74 = vmatprep.subr.bf16.mxu0 0
    %75 = vmatpush1.bf16.msra.mxu0 0
    %76 = vmatprep.subr.bf16.mxu0 0
    %77 = vmatpush1.bf16.msra.mxu0 0
    %78 = vmatprep.subr.bf16.mxu0 0
    %79 = vmatpush1.bf16.msra.mxu0 0
    %80 = vmatprep.subr.bf16.mxu0 0
    %81 = vmatpush1.bf16.msra.mxu0 0
    %82 = vmatprep.subr.bf16.mxu0 0
    %83 = vmatpush1.bf16.msra.mxu0 0
    %84 = vmatprep.subr.bf16.mxu0 0
    %85 = vmatpush1.bf16.msra.mxu0 0
    %86 = vmatprep.subr.bf16.mxu0 0
    %87 = vmatpush1.bf16.msra.mxu0 0
    %88 = vmatprep.subr.bf16.mxu0 0
    %89 = vmatpush1.bf16.msra.mxu0 0
    %90 = vmatprep.subr.bf16.mxu0 0
    %91 = vmatpush1.bf16.msra.mxu0 0
    %92 = vmatprep.subr.bf16.mxu0 0
    %93 = vmatpush1.bf16.msra.mxu0 0
    %94 = vmatprep.subr.bf16.mxu0 0
    %95 = vmatpush1.bf16.msra.mxu0 0
    %96 = vmatprep.subr.bf16.mxu0 0
    %97 = vmatpush1.bf16.msra.mxu0 0
    %98 = vmatprep.mubr.bf16.mxu0 0
    %99 = vmatmul.mubr.bf16.gmra.mrb[0].mxu0 %v57
    %v100 = vpop.f32.mrb[0].mxu0
    %v101 = vadd.f32 0.0, %v100
    %v102 = vpop.f32.mrb[0].mxu0
    %v103 = vpop.f32.mrb[0].mxu0
    %v104 = vadd.f32 0.0, %v103
    %v105 = vpop.f32.mrb[0].mxu0
    %106 = vmatprep.mubr.bf16.mxu0 0
    %107 = vmatmul.mubr.bf16.gmra.mrb[0].mxu0 %v60
    %v108 = vpop.f32.mrb[0].mxu0
    %v109 = vadd.f32 0.0, %v108
    %v110 = vpop.f32.mrb[0].mxu0
    %v111 = vpop.f32.mrb[0].mxu0
    %v112 = vadd.f32 0.0, %v111
    %v113 = vpop.f32.mrb[0].mxu0
    %114 = vdwg.mxu0
    %v115 = vmax.f32 %v101, 0.0
    %v116 = vmax.f32 %v104, 0.0
    %v117 = vmax.f32 %v109, 0.0
    %v118 = vmax.f32 %v112, 0.0
    %v119 = vpack.c.bf16 %v116, %v115
    %v120 = vpack.c.bf16 %v118, %v117
    %v121 = vld [vmem:[#allocation5 + $0x10] sm:$0xf]
    %v122 = vld [vmem:[#allocation5 + $0x14] sm:$0xf]
    %v123 = vld [vmem:[#allocation5 + $0x18] sm:$0xf]
    %v124 = vld [vmem:[#allocation5 + $0x1c] sm:$0xf]
    %v125 = vld [vmem:[#allocation5 + $0x20] sm:$0xf]
    %v131 = vunpack.c.l.b16 %v121
    %v132 = vunpack.c.l.b16 %v122
    %v133 = vunpack.c.l.b16 %v123
    %v134 = vunpack.c.l.b16 %v124
    %v135 = vunpack.c.l.b16 %v125
    %v136 = vpack.c.b16 %v132, %v131
    %v137 = vpack.c.b16 %v134, %v133
    %v138 = vpack.c.b16 %v135, %v135
    %vm139 = vcmask 261120
    %v141 = vsel %vm139, %v136, 0
    %v144 = vsel %vm139, %v137, 0
    %v147 = vsel %vm139, %v138, 0
    %149 = vmatprep.subr.bf16.mxu0 0
    %150 = vmatpush1.bf16.msra.mxu0 %v119
    %151 = vmatprep.subr.bf16.mxu0 0
    %152 = vmatpush1.bf16.msra.mxu0 %v120
    %153 = vmatprep.subr.bf16.mxu0 0
    %154 = vmatpush1.bf16.msra.mxu0 0
    %155 = vmatprep.subr.bf16.mxu0 0
    %156 = vmatpush1.bf16.msra.mxu0 0
    %157 = vmatprep.subr.bf16.mxu0 0
    %158 = vmatpush1.bf16.msra.mxu0 0
    %159 = vmatprep.subr.bf16.mxu0 0
    %160 = vmatpush1.bf16.msra.mxu0 0
    %161 = vmatprep.subr.bf16.mxu0 0
    %162 = vmatpush1.bf16.msra.mxu0 0
    %163 = vmatprep.subr.bf16.mxu0 0
    %164 = vmatpush1.bf16.msra.mxu0 0
    %165 = vmatprep.subr.bf16.mxu0 0
    %166 = vmatpush1.bf16.msra.mxu0 0
    %167 = vmatprep.subr.bf16.mxu0 0
    %168 = vmatpush1.bf16.msra.mxu0 0
    %169 = vmatprep.subr.bf16.mxu0 0
    %170 = vmatpush1.bf16.msra.mxu0 0
    %171 = vmatprep.subr.bf16.mxu0 0
    %172 = vmatpush1.bf16.msra.mxu0 0
    %173 = vmatprep.subr.bf16.mxu0 0
    %174 = vmatpush1.bf16.msra.mxu0 0
    %175 = vmatprep.subr.bf16.mxu0 0
    %176 = vmatpush1.bf16.msra.mxu0 0
    %177 = vmatprep.subr.bf16.mxu0 0
    %178 = vmatpush1.bf16.msra.mxu0 0
    %179 = vmatprep.subr.bf16.mxu0 0
    %180 = vmatpush1.bf16.msra.mxu0 0
    %181 = vmatprep.mubr.bf16.mxu0 0
    %182 = vmatmul.mubr.bf16.gmra.mrb[0].mxu0 %v141
    %v183 = vpop.f32.mrb[0].mxu0
    %v184 = vadd.f32 0.0, %v183
    %v185 = vpop.f32.mrb[0].mxu0
    %v186 = vpop.f32.mrb[0].mxu0
    %v187 = vadd.f32 0.0, %v186
    %v188 = vpop.f32.mrb[0].mxu0
    %189 = vmatprep.mubr.bf16.mxu0 0
    %190 = vmatmul.mubr.bf16.gmra.mrb[0].mxu0 %v144
    %v191 = vpop.f32.mrb[0].mxu0
    %v192 = vadd.f32 0.0, %v191
    %v193 = vpop.f32.mrb[0].mxu0
    %v194 = vpop.f32.mrb[0].mxu0
    %v195 = vadd.f32 0.0, %v194
    %v196 = vpop.f32.mrb[0].mxu0
    %197 = vmatprep.mubr.bf16.mxu0 0
    %198 = vmatmul.mubr.bf16.gmra.mrb[0].mxu0 %v147
    %v199 = vpop.f32.mrb[0].mxu0
    %v200 = vadd.f32 0.0, %v199
    %v201 = vpop.f32.mrb[0].mxu0
    %v202 = vpop.f32.mrb[0].mxu0
    %v203 = vpop.f32.mrb[0].mxu0
    %204 = vdwg.mxu0
    %v205 = vmax.f32 %v184, 0.0
    %v206 = vmax.f32 %v187, 0.0
    %v207 = vmax.f32 %v192, 0.0
    %v208 = vmax.f32 %v195, 0.0
    %v209 = vmax.f32 %v200, 0.0
    %v210 = vpack.c.bf16 %v206, %v205
    %v211 = vpack.c.bf16 %v208, %v207
    %v212 = vpack.c.bf16 %v209, %v209
    %v213 = vld [vmem:[#allocation5 + $0x28] sm:$0x1]
    %vm214 = vcmask 326656
    %v216 = vsel %vm214, %v213, 0
    %v219 = vsel %vm62, %v212, 0
    %221 = vmatprep.subr.bf16.mxu0 0
    %222 = vmatpush1.bf16.msra.mxu0 %v210
    %223 = vmatprep.subr.bf16.mxu0 0
    %224 = vmatpush1.bf16.msra.mxu0 %v211
    %225 = vmatprep.subr.bf16.mxu0 0
    %226 = vmatpush1.bf16.msra.mxu0 %v219
    %227 = vmatprep.subr.bf16.mxu0 0
    %228 = vmatpush1.bf16.msra.mxu0 0
    %229 = vmatprep.subr.bf16.mxu0 0
    %230 = vmatpush1.bf16.msra.mxu0 0
    %231 = vmatprep.subr.bf16.mxu0 0
    %232 = vmatpush1.bf16.msra.mxu0 0
    %233 = vmatprep.subr.bf16.mxu0 0
    %234 = vmatpush1.bf16.msra.mxu0 0
    %235 = vmatprep.subr.bf16.mxu0 0
    %236 = vmatpush1.bf16.msra.mxu0 0
    %237 = vmatprep.subr.bf16.mxu0 0
    %238 = vmatpush1.bf16.msra.mxu0 0
    %239 = vmatprep.subr.bf16.mxu0 0
    %240 = vmatpush1.bf16.msra.mxu0 0
    %241 = vmatprep.subr.bf16.mxu0 0
    %242 = vmatpush1.bf16.msra.mxu0 0
    %243 = vmatprep.subr.bf16.mxu0 0
    %244 = vmatpush1.bf16.msra.mxu0 0
    %245 = vmatprep.subr.bf16.mxu0 0
    %246 = vmatpush1.bf16.msra.mxu0 0
    %247 = vmatprep.subr.bf16.mxu0 0
    %248 = vmatpush1.bf16.msra.mxu0 0
    %249 = vmatprep.subr.bf16.mxu0 0
    %250 = vmatpush1.bf16.msra.mxu0 0
    %251 = vmatprep.subr.bf16.mxu0 0
    %252 = vmatpush1.bf16.msra.mxu0 0
    %253 = vmatprep.mubr.bf16.mxu0 0
    %254 = vmatmul.mubr.bf16.gmra.mrb[0].mxu0 %v216
    %v255 = vpop.f32.mrb[0].mxu0
    %v256 = vadd.f32 0.0, %v255
    %v257 = vpop.f32.mrb[0].mxu0
    %v258 = vpop.f32.mrb[0].mxu0
    %v259 = vpop.f32.mrb[0].mxu0
    %260 = vdwg.mxu0
    %261 = vst [vmem:[#allocation7] sm:$0x3] %v256
    // Predicated region
    $region18: #{tpu_custom_call.1} parent=1 // pred_check
      _
    $region19: #{tpu_custom_call.1} parent=1 // pred_check_branch
      %263 = sbr.rel (0) target = $region21
    $region20: #{tpu_custom_call.1} parent=1 // pred_region
      %s265 = ssub.s32 32, 32
      %266 = vsyncadd [#allocation4], %s265
      %s268 = sshll.u32 [#allocation7], 4
      %s269 = int_to_ptr.vmem [resolvable:$true] %s268
      %271 = dma.vmem_to_hbm [thread:$0]  %s269, 32, %s2, [#allocation4]
    $region21: #{tpu_custom_call.1} parent=1 // pred_fallthru
      _
    // Predicated region
    $region22: #{tpu_custom_call.1} parent=1 // pred_check
      _
    $region23: #{tpu_custom_call.1} parent=1 // pred_check_branch
      %273 = sbr.rel (0) target = $region25
    $region24: #{tpu_custom_call.1} parent=1 // pred_region
      %274 = dma.done [#allocation4], 32
    $region25: #{tpu_custom_call.1} parent=1 // pred_fallthru
      _
    %275 = vsyncpa [#allocation3], 1
    %276 = vsyncpa [#allocation6], 1
    %277 = vsyncpa [#allocation4], 1

</llo_original>
